<compile_context>
chip_gen: v7x
topology: tpu7x:2x2x1
jax: 0.10.0
libtpu: 0.0.40
codegen_flags: <defaults>
</compile_context>

<pallas_src>
import jax
import jax.numpy as jnp
from jax.experimental import pallas as pl
from jax.experimental.pallas import tpu as pltpu


def _round_up(x, m):
    return ((x + m - 1) // m) * m


def classifier_kernel(xt_ref, w1_ref, b1_ref, w2_ref, b2_ref, w3t_ref, b3_ref, ot_ref):
    # xt_ref: (d_in, TB)  -- batch on lanes
    xt = xt_ref[...]

    # fc1 + ReLU  (MXU, f32 accumulate; bias/ReLU on VPU in f32)
    h1 = jnp.dot(w1_ref[...], xt, preferred_element_type=jnp.float32)      # (h, TB)
    h1 = jnp.maximum(h1 + b1_ref[...], 0.0)

    # fc2 + ReLU
    h1 = h1.astype(w2_ref.dtype)
    h2 = jnp.dot(w2_ref[...], h1, preferred_element_type=jnp.float32)      # (h2, TB)
    h2 = jnp.maximum(h2 + b2_ref[...], 0.0)

    # fc3: output dim is tiny -> avoid an M=1 MXU pass.
    d_out = ot_ref.shape[0]
    w3t = w3t_ref[...].astype(jnp.float32)                                  # (h2, d_out)
    if d_out == 1:
        # VPU multiply + sublane reduce; result (1, TB) is already lane-dense.
        logits = jnp.sum(h2 * w3t, axis=0, keepdims=True)                   # (1, TB)
    else:
        logits = jax.lax.dot_general(
            w3t, h2, (((0,), (0,)), ((), ())),
            preferred_element_type=jnp.float32)                             # (d_out, TB)

    logits = logits + b3_ref[...]                                           # (d_out, 1) bcast
    ot_ref[...] = jax.nn.sigmoid(logits).astype(ot_ref.dtype)


def classifier_forward(x, params, *, batch_block=512, weight_dtype=jnp.float32):
    """x: (B, input_size) f32.  params in PyTorch layout: w (out, in), b (out,).

    weight_dtype: set to jnp.bfloat16 on v6e/v7x to halve weight traffic and use
    the bf16 MXU path (accumulation stays f32); keep f32 on v5e or for exact
    comparison against an f32 reference.
    """
    w1, b1, w2, b2, w3, b3 = (params[k] for k in ("w1", "b1", "w2", "b2", "w3", "b3"))
    B, d_in = x.shape
    h_dim = w1.shape[0]
    h2_dim = w2.shape[0]
    d_out = w3.shape[0]

    # Lane-dense tiling: batch on the 128-lane axis, padded to a lane multiple.
    LANE = 128
    bb = min(_round_up(batch_block, LANE), _round_up(B, LANE))
    B_pad = _round_up(B, bb)
    grid = (B_pad // bb,)

    # Layout plumbing in the wrapper (cheap): transpose + zero-pad the batch.
    xt = jnp.pad(x.T, ((0, 0), (0, B_pad - B))).astype(weight_dtype)        # (d_in, B_pad)
    w1c = w1.astype(weight_dtype)                                            # (h, d_in)
    w2c = w2.astype(weight_dtype)                                            # (h2, h)
    w3t = w3.T.astype(weight_dtype)                                          # (h2, d_out)
    b1c = b1.reshape(h_dim, 1).astype(jnp.float32)
    b2c = b2.reshape(h2_dim, 1).astype(jnp.float32)
    b3c = b3.reshape(d_out, 1).astype(jnp.float32)

    in_specs = [
        pl.BlockSpec((d_in, bb), lambda i: (0, i)),        # x tile (batch on lanes)
        pl.BlockSpec((h_dim, d_in), lambda i: (0, 0)),     # weights: constant index ->
        pl.BlockSpec((h_dim, 1), lambda i: (0, 0)),        #   VMEM-resident across steps
        pl.BlockSpec((h2_dim, h_dim), lambda i: (0, 0)),
        pl.BlockSpec((h2_dim, 1), lambda i: (0, 0)),
        pl.BlockSpec((h2_dim, d_out), lambda i: (0, 0)),
        pl.BlockSpec((d_out, 1), lambda i: (0, 0)),
    ]
    out_specs = pl.BlockSpec((d_out, bb), lambda i: (0, i))  # lane-dense output slab

    weight_bytes = sum(a.size * a.dtype.itemsize for a in (w1c, b1c, w2c, b2c, w3t, b3c))
    cost = pl.CostEstimate(
        flops=2 * B_pad * (d_in * h_dim + h_dim * h2_dim + h2_dim * d_out),
        transcendentals=B_pad * d_out,
        bytes_accessed=xt.size * xt.dtype.itemsize + weight_bytes + d_out * B_pad * 4,
    )

    out_t = pl.pallas_call(
        classifier_kernel,
        out_shape=jax.ShapeDtypeStruct((d_out, B_pad), jnp.float32),
        grid_spec=pl.GridSpec(
            grid=grid,
            in_specs=in_specs,
            out_specs=out_specs,
        ),
        compiler_params=pltpu.CompilerParams(
            dimension_semantics=("parallel",),
        ),
        cost_estimate=cost,
    )(xt, w1c, b1c, w2c, b2c, w3t, b3c)

    # Back to PyTorch layout (B, d_out); drop batch padding.
    return out_t[:, :B].T


def init_params(key, input_size, hidden_size, output_size):
    """Deterministic synthetic init in PyTorch nn.Linear layout: W (out, in), b (out,)."""
    ks = jax.random.split(key, 6)

    def lin(kw, kb, fan_in, fan_out):
        bound = 1.0 / (fan_in ** 0.5)
        w = jax.random.uniform(kw, (fan_out, fan_in), jnp.float32, -bound, bound)
        b = jax.random.uniform(kb, (fan_out,), jnp.float32, -bound, bound)
        return w, b

    w1, b1 = lin(ks[0], ks[1], input_size, hidden_size)
    w2, b2 = lin(ks[2], ks[3], hidden_size, hidden_size // 2)
    w3, b3 = lin(ks[4], ks[5], hidden_size // 2, output_size)
    return {"w1": w1, "b1": b1, "w2": w2, "b2": b2, "w3": w3, "b3": b3}


def reference_forward(x, p):
    h1 = jnp.maximum(x @ p["w1"].T + p["b1"], 0.0)
    h2 = jnp.maximum(h1 @ p["w2"].T + p["b2"], 0.0)
    return jax.nn.sigmoid(h2 @ p["w3"].T + p["b3"])


if __name__ == "__main__":
    # Shapes consistent with the module: batch=16, input=32, hidden=32, out=1.
    INPUT_SIZE, HIDDEN_SIZE, OUTPUT_SIZE = 32, 32, 1
    BATCH = 16

    key = jax.random.PRNGKey(0)
    kx, kp = jax.random.split(key)
    x = jax.random.normal(kx, (BATCH, INPUT_SIZE), jnp.float32)
    params = init_params(kp, INPUT_SIZE, HIDDEN_SIZE, OUTPUT_SIZE)

    # f32 weights here for an exact check; pass weight_dtype=jnp.bfloat16 on v6e/v7x.
    out = classifier_forward(x, params)
    out = jax.block_until_ready(out)

    ref = reference_forward(x, params)
    assert out.shape == (BATCH, OUTPUT_SIZE)
    assert jnp.allclose(out, ref, atol=1e-5, rtol=1e-5), "mismatch vs JAX reference"

    print("KERNEL_OK")
</pallas_src>

<mosaic_0001>
module attributes {stable_mosaic.version = 11 : i64} {
  func.func @classifier_kernel(%arg0: i32, %arg1: memref<32x128xf32, #tpu.memory_space<vmem>>, %arg2: memref<32x32xf32, #tpu.memory_space<vmem>>, %arg3: memref<32x1xf32, #tpu.memory_space<vmem>>, %arg4: memref<16x32xf32, #tpu.memory_space<vmem>>, %arg5: memref<16x1xf32, #tpu.memory_space<vmem>>, %arg6: memref<16x1xf32, #tpu.memory_space<vmem>>, %arg7: memref<1x1xf32, #tpu.memory_space<vmem>>, %arg8: memref<1x128xf32, #tpu.memory_space<vmem>>) attributes {dimension_semantics = [#tpu.dimension_semantics<parallel>], iteration_bounds = array<i64: 1>, scalar_prefetch = 0 : i64, scratch_operands = 0 : i64, tpu.core_type = #tpu.core_type<tc>, window_params = [{transform_indices = @transform_0, window_bounds = array<i64: 32, 128>}, {pipeline_mode = #tpu.pipeline_mode<synchronous>, transform_indices = @transform_1, window_bounds = array<i64: 32, 32>}, {pipeline_mode = #tpu.pipeline_mode<synchronous>, transform_indices = @transform_2, window_bounds = array<i64: 32, 1>}, {pipeline_mode = #tpu.pipeline_mode<synchronous>, transform_indices = @transform_3, window_bounds = array<i64: 16, 32>}, {pipeline_mode = #tpu.pipeline_mode<synchronous>, transform_indices = @transform_4, window_bounds = array<i64: 16, 1>}, {pipeline_mode = #tpu.pipeline_mode<synchronous>, transform_indices = @transform_5, window_bounds = array<i64: 16, 1>}, {pipeline_mode = #tpu.pipeline_mode<synchronous>, transform_indices = @transform_6, window_bounds = array<i64: 1, 1>}, {transform_indices = @transform_7, window_bounds = array<i64: 1, 128>}]} {
    %c0 = arith.constant 0 : index
    %c0_0 = arith.constant 0 : index
    %0 = vector.load %arg1[%c0, %c0_0] : memref<32x128xf32, #tpu.memory_space<vmem>>, vector<32x128xf32>
    %c0_1 = arith.constant 0 : index
    %c0_2 = arith.constant 0 : index
    %1 = vector.load %arg2[%c0_1, %c0_2] : memref<32x32xf32, #tpu.memory_space<vmem>>, vector<32x32xf32>
    %cst = arith.constant dense<0.000000e+00> : vector<32x128xf32>
    %2 = tpu.matmul %1, %0, %cst {dimension_numbers = #tpu.dot_dimension_numbers<[1], [0], [0], [1], [0, 0, 1, 1], [], []>} : vector<32x32xf32>, vector<32x128xf32>, vector<32x128xf32> -> vector<32x128xf32>
    %c0_3 = arith.constant 0 : index
    %c0_4 = arith.constant 0 : index
    %3 = vector.load %arg3[%c0_3, %c0_4] : memref<32x1xf32, #tpu.memory_space<vmem>>, vector<32x1xf32>
    %4 = vector.broadcast %3 : vector<32x1xf32> to vector<32x128xf32>
    %5 = arith.addf %2, %4 : vector<32x128xf32>
    %cst_5 = arith.constant 0.000000e+00 : f32
    %6 = vector.broadcast %cst_5 : f32 to vector<32x128xf32>
    %7 = arith.maximumf %5, %6 : vector<32x128xf32>
    %c0_6 = arith.constant 0 : index
    %c0_7 = arith.constant 0 : index
    %8 = vector.load %arg4[%c0_6, %c0_7] : memref<16x32xf32, #tpu.memory_space<vmem>>, vector<16x32xf32>
    %cst_8 = arith.constant dense<0.000000e+00> : vector<16x128xf32>
    %9 = tpu.matmul %8, %7, %cst_8 {dimension_numbers = #tpu.dot_dimension_numbers<[1], [0], [0], [1], [0, 0, 1, 1], [], []>} : vector<16x32xf32>, vector<32x128xf32>, vector<16x128xf32> -> vector<16x128xf32>
    %c0_9 = arith.constant 0 : index
    %c0_10 = arith.constant 0 : index
    %10 = vector.load %arg5[%c0_9, %c0_10] : memref<16x1xf32, #tpu.memory_space<vmem>>, vector<16x1xf32>
    %11 = vector.broadcast %10 : vector<16x1xf32> to vector<16x128xf32>
    %12 = arith.addf %9, %11 : vector<16x128xf32>
    %cst_11 = arith.constant 0.000000e+00 : f32
    %13 = vector.broadcast %cst_11 : f32 to vector<16x128xf32>
    %14 = arith.maximumf %12, %13 : vector<16x128xf32>
    %c0_12 = arith.constant 0 : index
    %c0_13 = arith.constant 0 : index
    %15 = vector.load %arg6[%c0_12, %c0_13] : memref<16x1xf32, #tpu.memory_space<vmem>>, vector<16x1xf32>
    %16 = vector.broadcast %15 : vector<16x1xf32> to vector<16x128xf32>
    %17 = arith.mulf %14, %16 : vector<16x128xf32>
    %cst_14 = arith.constant dense<0.000000e+00> : vector<128xf32>
    %18 = vector.multi_reduction <add>, %17, %cst_14 [0] : vector<16x128xf32> to vector<128xf32>
    %19 = vector.shape_cast %18 : vector<128xf32> to vector<1x128xf32>
    %c0_15 = arith.constant 0 : index
    %c0_16 = arith.constant 0 : index
    %20 = vector.load %arg7[%c0_15, %c0_16] : memref<1x1xf32, #tpu.memory_space<vmem>>, vector<1x1xf32>
    %21 = vector.broadcast %20 : vector<1x1xf32> to vector<1x128xf32>
    %22 = arith.addf %19, %21 : vector<1x128xf32>
    %23 = arith.negf %22 : vector<1x128xf32>
    %24 = math.exp %23 : vector<1x128xf32>
    %cst_17 = arith.constant 1.000000e+00 : f32
    %25 = vector.broadcast %cst_17 : f32 to vector<1x128xf32>
    %26 = arith.addf %25, %24 : vector<1x128xf32>
    %27 = arith.divf %25, %26 : vector<1x128xf32>
    %c0_18 = arith.constant 0 : index
    %c0_19 = arith.constant 0 : index
    %28 = vector.load %arg8[%c0_18, %c0_19] : memref<1x128xf32, #tpu.memory_space<vmem>>, vector<1x128xf32>
    tpu.vector_store %arg8[%c0_18, %c0_19], %27 {strides = array<i32>} : memref<1x128xf32, #tpu.memory_space<vmem>>, vector<1x128xf32>,
    return
  }
  func.func @transform_0(%arg0: i32) -> (i32, i32) {
    %c0_i32 = arith.constant 0 : i32
    %c0_i32_0 = arith.constant 0 : i32
    return %c0_i32, %arg0 : i32, i32
  }
  func.func @transform_1(%arg0: i32) -> (i32, i32) {
    %c0_i32 = arith.constant 0 : i32
    %c0_i32_0 = arith.constant 0 : i32
    %c0_i32_1 = arith.constant 0 : i32
    return %c0_i32, %c0_i32_0 : i32, i32
  }
  func.func @transform_2(%arg0: i32) -> (i32, i32) {
    %c0_i32 = arith.constant 0 : i32
    %c0_i32_0 = arith.constant 0 : i32
    %c0_i32_1 = arith.constant 0 : i32
    return %c0_i32, %c0_i32_0 : i32, i32
  }
  func.func @transform_3(%arg0: i32) -> (i32, i32) {
    %c0_i32 = arith.constant 0 : i32
    %c0_i32_0 = arith.constant 0 : i32
    %c0_i32_1 = arith.constant 0 : i32
    return %c0_i32, %c0_i32_0 : i32, i32
  }
  func.func @transform_4(%arg0: i32) -> (i32, i32) {
    %c0_i32 = arith.constant 0 : i32
    %c0_i32_0 = arith.constant 0 : i32
    %c0_i32_1 = arith.constant 0 : i32
    return %c0_i32, %c0_i32_0 : i32, i32
  }
  func.func @transform_5(%arg0: i32) -> (i32, i32) {
    %c0_i32 = arith.constant 0 : i32
    %c0_i32_0 = arith.constant 0 : i32
    %c0_i32_1 = arith.constant 0 : i32
    return %c0_i32, %c0_i32_0 : i32, i32
  }
  func.func @transform_6(%arg0: i32) -> (i32, i32) {
    %c0_i32 = arith.constant 0 : i32
    %c0_i32_0 = arith.constant 0 : i32
    %c0_i32_1 = arith.constant 0 : i32
    return %c0_i32, %c0_i32_0 : i32, i32
  }
  func.func @transform_7(%arg0: i32) -> (i32, i32) {
    %c0_i32 = arith.constant 0 : i32
    %c0_i32_0 = arith.constant 0 : i32
    return %c0_i32, %arg0 : i32, i32
  }
}

</mosaic_0001>

<llo_original>
// kernel: tpu_custom_call.1
$region0: #{tpu_custom_call.1}
  #allocation0 [shape = 'u32[]', space=smem, size = 0x4, offset = 0x4, fixed_abs, tag = 'smem constant byte address 0x4 - core index']
  #allocation1 [shape = 'u32[144,128]{1,0:T(1,128)}', space=vmem, size = 0x12000, scoped, tag = 'internal scratch']
  #allocation2 [shape = 'f32[1,1]{1,0:T(1,128)S(1)}', space=vmem, size = 0x200, scoped, tag = 'scoped memory for tpu_custom_call.1']
  %s0 = inlined_call_operand.vmem [shape: f32[32,128], index: 0, kind: input, shape index: {}]
  %s1 = inlined_call_operand.vmem [shape: f32[32,32], index: 1, kind: input, shape index: {}]
  %s2 = inlined_call_operand.vmem [shape: f32[32,1], index: 2, kind: input, shape index: {}]
  %s3 = inlined_call_operand.vmem [shape: f32[16,32], index: 3, kind: input, shape index: {}]
  %s4 = inlined_call_operand.vmem [shape: f32[16,1], index: 4, kind: input, shape index: {}]
  %s5 = inlined_call_operand.vmem [shape: f32[16,1], index: 5, kind: input, shape index: {}]
  %s6 = inlined_call_operand.<no memory space> [shape: f32[1,1], index: 6, kind: input, shape index: {}]
  %s7 = inlined_call_operand.hbm [shape: f32[1,128], index: 7, kind: output, shape index: {}]
  %s8 = sld [smem:[#allocation0]]
  $region38: #{tpu_custom_call.1} parent=0
    _
  %s10 = ssub.s32 1, %s8
  %s11 = scalar_select 0, %s10, %s8
  %v12 = vstv %s6
  %13 = vst [vmem:[#allocation2] sm:$0x1] %v12
  $region1: #{tpu_custom_call.1} parent=0
    #allocation3 [shape = 'u8[512]{0}', space=vmem, size = 0x400, scoped, tag = 'output window, operand 0, single buffered']
    #allocation4 [shape = 's32[1]{0}', space=sflag, size = 0x4, scoped, tag = 'scoped memory for tpu_custom_call.1']
    %14 = vsyncpa [#allocation4], 0
    // Predicated region
    $region2: #{tpu_custom_call.1} parent=1 // pred_check
      _
    $region3: #{tpu_custom_call.1} parent=1 // pred_check_branch
      %16 = sbr.rel (0) target = $region5
    $region4: #{tpu_custom_call.1} parent=1 // pred_region
      _
    $region5: #{tpu_custom_call.1} parent=1 // pred_fallthru
      _
    // Predicated region
    $region6: #{tpu_custom_call.1} parent=1 // pred_check
      _
    $region7: #{tpu_custom_call.1} parent=1 // pred_check_branch
      %18 = sbr.rel (0) target = $region9
    $region8: #{tpu_custom_call.1} parent=1 // pred_region
      _
    $region9: #{tpu_custom_call.1} parent=1 // pred_fallthru
      _
    // Predicated region
    $region10: #{tpu_custom_call.1} parent=1 // pred_check
      _
    $region11: #{tpu_custom_call.1} parent=1 // pred_check_branch
      %20 = sbr.rel (0) target = $region13
    $region12: #{tpu_custom_call.1} parent=1 // pred_region
      _
    $region13: #{tpu_custom_call.1} parent=1 // pred_fallthru
      _
    // Predicated region
    $region14: #{tpu_custom_call.1} parent=1 // pred_check
      _
    $region15: #{tpu_custom_call.1} parent=1 // pred_check_branch
      %22 = sbr.rel (0) target = $region17
    $region16: #{tpu_custom_call.1} parent=1 // pred_region
      _
    $region17: #{tpu_custom_call.1} parent=1 // pred_fallthru
      _
    // Predicated region
    $region18: #{tpu_custom_call.1} parent=1 // pred_check
      _
    $region19: #{tpu_custom_call.1} parent=1 // pred_check_branch
      %24 = sbr.rel (0) target = $region21
    $region20: #{tpu_custom_call.1} parent=1 // pred_region
      _
    $region21: #{tpu_custom_call.1} parent=1 // pred_fallthru
      _
    // Predicated region
    $region22: #{tpu_custom_call.1} parent=1 // pred_check
      _
    $region23: #{tpu_custom_call.1} parent=1 // pred_check_branch
      %26 = sbr.rel (0) target = $region25
    $region24: #{tpu_custom_call.1} parent=1 // pred_region
      _
    $region25: #{tpu_custom_call.1} parent=1 // pred_fallthru
      _
    // Predicated region
    $region26: #{tpu_custom_call.1} parent=1 // pred_check
      _
    $region27: #{tpu_custom_call.1} parent=1 // pred_check_branch
      %28 = sbr.rel (0) target = $region29
    $region28: #{tpu_custom_call.1} parent=1 // pred_region
      _
    $region29: #{tpu_custom_call.1} parent=1 // pred_fallthru
      _
    %v29 = vld [vmem:[%s0] sm:$0xff]
    %v30 = vld [vmem:[%s0 + $0x8] sm:$0xff]
    %v31 = vld [vmem:[%s0 + $0x10] sm:$0xff]
    %v32 = vld [vmem:[%s0 + $0x18] sm:$0xff]
    %v33 = vld [vmem:[%s1] sm:$0xff]
    %v34 = vld [vmem:[%s1 + $0x8] sm:$0xff]
    %v35 = vld [vmem:[%s1 + $0x10] sm:$0xff]
    %v36 = vld [vmem:[%s1 + $0x18] sm:$0xff]
    %v37 = vld [vmem:[%s2] sm:$0xff]
    %v38 = vld [vmem:[%s2 + $0x8] sm:$0xff]
    %v39 = vld [vmem:[%s2 + $0x10] sm:$0xff]
    %v40 = vld [vmem:[%s2 + $0x18] sm:$0xff]
    %42 = vset.pattern.permute.xlu0 0
    %43 = vperm.xlu0 %42, %v37
    %v44 = vpop.permute.xlu0 %43
    %47 = vset.pattern.permute.xlu0 0
    %48 = vperm.xlu0 %47, %v38
    %v49 = vpop.permute.xlu0 %48
    %52 = vset.pattern.permute.xlu0 0
    %53 = vperm.xlu0 %52, %v39
    %v54 = vpop.permute.xlu0 %53
    %57 = vset.pattern.permute.xlu0 0
    %58 = vperm.xlu0 %57, %v40
    %v59 = vpop.permute.xlu0 %58
    %vm61 = vcmask 261120
    %v63 = vsel %vm61, %v33, 0
    %v66 = vsel %vm61, %v34, 0
    %v69 = vsel %vm61, %v35, 0
    %v72 = vsel %vm61, %v36, 0
    %74 = vmatprep.subr.mxu0 0.0
    %75 = vmatpush1.msra.mxu0 %v29
    %76 = vmatprep.subr.mxu0 0.0
    %77 = vmatpush1.msra.mxu0 %v30
    %78 = vmatprep.subr.mxu0 0.0
    %79 = vmatpush1.msra.mxu0 %v31
    %80 = vmatprep.subr.mxu0 0.0
    %81 = vmatpush1.msra.mxu0 %v32
    %82 = vmatprep.subr.mxu0 0.0
    %83 = vmatpush1.msra.mxu0 0.0
    %84 = vmatprep.subr.mxu0 0.0
    %85 = vmatpush1.msra.mxu0 0.0
    %86 = vmatprep.subr.mxu0 0.0
    %87 = vmatpush1.msra.mxu0 0.0
    %88 = vmatprep.subr.mxu0 0.0
    %89 = vmatpush1.msra.mxu0 0.0
    %90 = vmatprep.subr.mxu0 0.0
    %91 = vmatpush1.msra.mxu0 0.0
    %92 = vmatprep.subr.mxu0 0.0
    %93 = vmatpush1.msra.mxu0 0.0
    %94 = vmatprep.subr.mxu0 0.0
    %95 = vmatpush1.msra.mxu0 0.0
    %96 = vmatprep.subr.mxu0 0.0
    %97 = vmatpush1.msra.mxu0 0.0
    %98 = vmatprep.subr.mxu0 0.0
    %99 = vmatpush1.msra.mxu0 0.0
    %100 = vmatprep.subr.mxu0 0.0
    %101 = vmatpush1.msra.mxu0 0.0
    %102 = vmatprep.subr.mxu0 0.0
    %103 = vmatpush1.msra.mxu0 0.0
    %104 = vmatprep.subr.mxu0 0.0
    %105 = vmatpush1.msra.mxu0 0.0
    %106 = vmatprep.subr.mxu0 0.0
    %107 = vmatpush1.msra.mxu0 0.0
    %108 = vmatprep.subr.mxu0 0.0
    %109 = vmatpush1.msra.mxu0 0.0
    %110 = vmatprep.subr.mxu0 0.0
    %111 = vmatpush1.msra.mxu0 0.0
    %112 = vmatprep.subr.mxu0 0.0
    %113 = vmatpush1.msra.mxu0 0.0
    %114 = vmatprep.subr.mxu0 0.0
    %115 = vmatpush1.msra.mxu0 0.0
    %116 = vmatprep.subr.mxu0 0.0
    %117 = vmatpush1.msra.mxu0 0.0
    %118 = vmatprep.subr.mxu0 0.0
    %119 = vmatpush1.msra.mxu0 0.0
    %120 = vmatprep.subr.mxu0 0.0
    %121 = vmatpush1.msra.mxu0 0.0
    %122 = vmatprep.subr.mxu0 0.0
    %123 = vmatpush1.msra.mxu0 0.0
    %124 = vmatprep.subr.mxu0 0.0
    %125 = vmatpush1.msra.mxu0 0.0
    %126 = vmatprep.subr.mxu0 0.0
    %127 = vmatpush1.msra.mxu0 0.0
    %128 = vmatprep.subr.mxu0 0.0
    %129 = vmatpush1.msra.mxu0 0.0
    %130 = vmatprep.subr.mxu0 0.0
    %131 = vmatpush1.msra.mxu0 0.0
    %132 = vmatprep.subr.mxu0 0.0
    %133 = vmatpush1.msra.mxu0 0.0
    %134 = vmatprep.subr.mxu0 0.0
    %135 = vmatpush1.msra.mxu0 0.0
    %136 = vmatprep.subr.mxu0 0.0
    %137 = vmatpush1.msra.mxu0 0.0
    %138 = vmatprep.mubr.f32.mxu0 0.0
    %139 = vmatmul.mubr.f32.gmra.mrb[0].mxu0 %v63
    %v140 = vpop.f32.mrb[0].mxu0
    %v141 = vadd.f32 %v44, %v140
    %v142 = vpop.f32.mrb[0].mxu0
    %143 = vmatprep.mubr.f32.mxu0 0.0
    %144 = vmatmul.mubr.f32.gmra.mrb[0].mxu0 %v66
    %v145 = vpop.f32.mrb[0].mxu0
    %v146 = vadd.f32 %v49, %v145
    %v147 = vpop.f32.mrb[0].mxu0
    %148 = vmatprep.mubr.f32.mxu0 0.0
    %149 = vmatmul.mubr.f32.gmra.mrb[0].mxu0 %v69
    %v150 = vpop.f32.mrb[0].mxu0
    %v151 = vadd.f32 %v54, %v150
    %v152 = vpop.f32.mrb[0].mxu0
    %153 = vmatprep.mubr.f32.mxu0 0.0
    %154 = vmatmul.mubr.f32.gmra.mrb[0].mxu0 %v72
    %v155 = vpop.f32.mrb[0].mxu0
    %v156 = vadd.f32 %v59, %v155
    %v157 = vpop.f32.mrb[0].mxu0
    %158 = vdwg.mxu0
    %v159 = vmax.f32 %v141, 0.0
    %v160 = vmax.f32 %v146, 0.0
    %v161 = vmax.f32 %v151, 0.0
    %v162 = vmax.f32 %v156, 0.0
    %v163 = vld [vmem:[%s3] sm:$0xff]
    %v164 = vld [vmem:[%s3 + $0x8] sm:$0xff]
    %v165 = vld [vmem:[%s4] sm:$0xff]
    %v166 = vld [vmem:[%s4 + $0x8] sm:$0xff]
    %168 = vset.pattern.permute.xlu0 0
    %169 = vperm.xlu0 %168, %v165
    %v170 = vpop.permute.xlu0 %169
    %173 = vset.pattern.permute.xlu0 0
    %174 = vperm.xlu0 %173, %v166
    %v175 = vpop.permute.xlu0 %174
    %v178 = vsel %vm61, %v163, 0
    %v181 = vsel %vm61, %v164, 0
    %183 = vmatprep.subr.mxu0 0.0
    %184 = vmatpush1.msra.mxu0 %v159
    %185 = vmatprep.subr.mxu0 0.0
    %186 = vmatpush1.msra.mxu0 %v160
    %187 = vmatprep.subr.mxu0 0.0
    %188 = vmatpush1.msra.mxu0 %v161
    %189 = vmatprep.subr.mxu0 0.0
    %190 = vmatpush1.msra.mxu0 %v162
    %191 = vmatprep.subr.mxu0 0.0
    %192 = vmatpush1.msra.mxu0 0.0
    %193 = vmatprep.subr.mxu0 0.0
    %194 = vmatpush1.msra.mxu0 0.0
    %195 = vmatprep.subr.mxu0 0.0
    %196 = vmatpush1.msra.mxu0 0.0
    %197 = vmatprep.subr.mxu0 0.0
    %198 = vmatpush1.msra.mxu0 0.0
    %199 = vmatprep.subr.mxu0 0.0
    %200 = vmatpush1.msra.mxu0 0.0
    %201 = vmatprep.subr.mxu0 0.0
    %202 = vmatpush1.msra.mxu0 0.0
    %203 = vmatprep.subr.mxu0 0.0
    %204 = vmatpush1.msra.mxu0 0.0
    %205 = vmatprep.subr.mxu0 0.0
    %206 = vmatpush1.msra.mxu0 0.0
    %207 = vmatprep.subr.mxu0 0.0
    %208 = vmatpush1.msra.mxu0 0.0
    %209 = vmatprep.subr.mxu0 0.0
    %210 = vmatpush1.msra.mxu0 0.0
    %211 = vmatprep.subr.mxu0 0.0
    %212 = vmatpush1.msra.mxu0 0.0
    %213 = vmatprep.subr.mxu0 0.0
    %214 = vmatpush1.msra.mxu0 0.0
    %215 = vmatprep.subr.mxu0 0.0
    %216 = vmatpush1.msra.mxu0 0.0
    %217 = vmatprep.subr.mxu0 0.0
    %218 = vmatpush1.msra.mxu0 0.0
    %219 = vmatprep.subr.mxu0 0.0
    %220 = vmatpush1.msra.mxu0 0.0
    %221 = vmatprep.subr.mxu0 0.0
    %222 = vmatpush1.msra.mxu0 0.0
    %223 = vmatprep.subr.mxu0 0.0
    %224 = vmatpush1.msra.mxu0 0.0
    %225 = vmatprep.subr.mxu0 0.0
    %226 = vmatpush1.msra.mxu0 0.0
    %227 = vmatprep.subr.mxu0 0.0
    %228 = vmatpush1.msra.mxu0 0.0
    %229 = vmatprep.subr.mxu0 0.0
    %230 = vmatpush1.msra.mxu0 0.0
    %231 = vmatprep.subr.mxu0 0.0
    %232 = vmatpush1.msra.mxu0 0.0
    %233 = vmatprep.subr.mxu0 0.0
    %234 = vmatpush1.msra.mxu0 0.0
    %235 = vmatprep.subr.mxu0 0.0
    %236 = vmatpush1.msra.mxu0 0.0
    %237 = vmatprep.subr.mxu0 0.0
    %238 = vmatpush1.msra.mxu0 0.0
    %239 = vmatprep.subr.mxu0 0.0
    %240 = vmatpush1.msra.mxu0 0.0
    %241 = vmatprep.subr.mxu0 0.0
    %242 = vmatpush1.msra.mxu0 0.0
    %243 = vmatprep.subr.mxu0 0.0
    %244 = vmatpush1.msra.mxu0 0.0
    %245 = vmatprep.subr.mxu0 0.0
    %246 = vmatpush1.msra.mxu0 0.0
    %247 = vmatprep.mubr.f32.mxu0 0.0
    %248 = vmatmul.mubr.f32.gmra.mrb[0].mxu0 %v178
    %v249 = vpop.f32.mrb[0].mxu0
    %v250 = vadd.f32 %v170, %v249
    %v251 = vpop.f32.mrb[0].mxu0
    %252 = vmatprep.mubr.f32.mxu0 0.0
    %253 = vmatmul.mubr.f32.gmra.mrb[0].mxu0 %v181
    %v254 = vpop.f32.mrb[0].mxu0
    %v255 = vadd.f32 %v175, %v254
    %v256 = vpop.f32.mrb[0].mxu0
    %257 = vdwg.mxu0
    %v258 = vmax.f32 %v250, 0.0
    %v259 = vmax.f32 %v255, 0.0
    %v260 = vld [vmem:[%s5] sm:$0xff]
    %v261 = vld [vmem:[%s5 + $0x8] sm:$0xff]
    %263 = vset.pattern.permute.xlu0 0
    %264 = vperm.xlu0 %263, %v260
    %v265 = vpop.permute.xlu0 %264
    %268 = vset.pattern.permute.xlu0 0
    %269 = vperm.xlu0 %268, %v261
    %v270 = vpop.permute.xlu0 %269
    %v272 = vmul.f32 %v258, %v265
    %v273 = vmul.f32 %v259, %v270
    %v274 = vadd.f32 %v272, %v273
    %v275 = vrot.slane %v274, 4
    %v276 = vadd.f32 %v274, %v275
    %v277 = vrot.slane %v276, 2
    %v278 = vadd.f32 %v276, %v277
    %v279 = vrot.slane %v278, 1
    %v280 = vadd.f32 %v278, %v279
    %v281 = vld [vmem:[#allocation2] sm:$0x1]
    %283 = vset.pattern.permute.xlu0 0
    %284 = vperm.xlu0 %283, %v281
    %v285 = vpop.permute.xlu0 %284
    %v287 = vlaneseq
    %v288 = vshrl.u32 %v287, 7
    %v289 = vsub.s32 0, %v288
    %v290 = vrot.slane %v285, %v289
    %v291 = vadd.f32 %v280, %v290
    %v292 = vxor.u32 %v291, 2147483648
    %v293 = vmul.f32 %v292, 1.442695
    %v294 = vpow.pop %v293
    %v295 = vadd.f32 %v294, 1.0
    %v296 = vrcp.pop %v295
    %v297 = vmul.f32 1.0, %v296
    %298 = vst [vmem:[#allocation3] sm:$0x1] %v297
    // Predicated region
    $region30: #{tpu_custom_call.1} parent=1 // pred_check
      _
    $region31: #{tpu_custom_call.1} parent=1 // pred_check_branch
      %300 = sbr.rel (0) target = $region33
    $region32: #{tpu_custom_call.1} parent=1 // pred_region
      %s302 = ssub.s32 16, 16
      %303 = vsyncadd [#allocation4], %s302
      %s305 = sshll.u32 [#allocation3], 4
      %s306 = int_to_ptr.vmem [resolvable:$true] %s305
      %308 = dma.vmem_to_hbm [thread:$0]  %s306, 16, %s7, [#allocation4]
    $region33: #{tpu_custom_call.1} parent=1 // pred_fallthru
      _
    // Predicated region
    $region34: #{tpu_custom_call.1} parent=1 // pred_check
      _
    $region35: #{tpu_custom_call.1} parent=1 // pred_check_branch
      %310 = sbr.rel (0) target = $region37
    $region36: #{tpu_custom_call.1} parent=1 // pred_region
      %311 = dma.done [#allocation4], 16
    $region37: #{tpu_custom_call.1} parent=1 // pred_fallthru
      _
    %312 = vsyncpa [#allocation4], 1

</llo_original>
